<compile_context>
chip_gen: v7x
topology: tpu7x:2x2x1
jax: 0.10.0
libtpu: 0.0.40
codegen_flags: <defaults>
</compile_context>

<pallas_src>
import math

import jax
import jax.numpy as jnp
from jax.experimental import pallas as pl
from jax.experimental.pallas import tpu as pltpu


def _eqlr_scale_kernel(scale_ref, x_ref, o_ref):
    # scale_ref: (1, 1) f32 in SMEM  (the equalized-LR norm constant)
    # x_ref/o_ref: (bt, F2) lane-dense VMEM tiles (F2 multiple of 128)
    s = scale_ref[0, 0].astype(x_ref.dtype)  # multiply in native packed dtype
    o_ref[...] = x_ref[...] * s


def _pick_lane_width(total, max_lanes=8192):
    """Largest multiple of 128 that divides `total`, capped at `max_lanes`.

    Returns 0 if `total` is not divisible by 128 (caller uses a fixed slab
    width plus a plain-JAX tail in that case).
    """
    if total % 128 != 0:
        return 0
    m = total // 128
    k_max = max(1, max_lanes // 128)
    for k in range(min(k_max, m), 0, -1):
        if m % k == 0:
            return 128 * k
    return 128


def _eqlr_scale_pallas(x2, scale_f32, *, alias_input=False):
    """Pallas call on a lane-dense 2-D view x2 of shape (rows, F2)."""
    rows, f2 = x2.shape
    itemsize = x2.dtype.itemsize

    # Generation-aware VMEM budgeting (v7x: 64 MiB per TC; v5e/v6e: 128 MiB).
    try:
        vmem_cap = int(pltpu.get_tpu_info().vmem_capacity_bytes)
    except Exception:
        vmem_cap = 64 * 1024 * 1024  # conservative fallback (v7x per-TC)
    block_bytes = max(1 << 20, vmem_cap // 8)        # ~8 MiB v7x, ~16 MiB v5e/v6e
    vmem_limit = (vmem_cap * 3) // 4                 # 2x(in+out) buffers <= 2/3 of this

    # Rows per block: bounded by block_bytes, and small enough that the grid
    # has >= ~4 steps so double-buffering (and megacore sharding) engages.
    row_bytes = max(1, f2 * itemsize)
    bt_bytes = max(8, ((block_bytes // row_bytes) // 8) * 8)
    bt_steps = max(8, ((pl.cdiv(rows, 4) + 7) // 8) * 8)
    bt = min(bt_bytes, bt_steps)
    if bt >= rows:
        bt = rows  # single full block: block dim == full array dim is legal
    grid = (pl.cdiv(rows, bt),)

    scale = scale_f32.reshape(1, 1)

    extra_kwargs = {}
    if alias_input:
        # Only safe when the caller does not reuse x afterwards; halves HBM
        # footprint for large activation tensors.
        extra_kwargs["input_output_aliases"] = {1: 0}

    # TODO(synk): on v7x, dimension_semantics=(pltpu.CORE_PARALLEL,) shards the
    # grid across the 2 TensorCores; kept "parallel" for cross-generation safety.
    return pl.pallas_call(
        _eqlr_scale_kernel,
        out_shape=jax.ShapeDtypeStruct((rows, f2), x2.dtype),
        grid_spec=pltpu.PrefetchScalarGridSpec(
            num_scalar_prefetch=0,
            grid=grid,
            in_specs=[
                pl.BlockSpec(memory_space=pltpu.MemorySpace.SMEM),  # scale
                pl.BlockSpec((bt, f2), lambda i: (i, 0)),           # x chunk
            ],
            out_specs=pl.BlockSpec((bt, f2), lambda i: (i, 0)),
        ),
        compiler_params=pltpu.CompilerParams(
            dimension_semantics=("parallel",),
            vmem_limit_bytes=vmem_limit,
        ),
        **extra_kwargs,
    )(scale, x2)


def equalized_lr_forward(x, layer_norm_constant, *,
                         min_pallas_bytes=1 << 20,
                         alias_input=False):
    """y = layer_norm_constant * x  (EqualizedLearningRateLayer.forward).

    Args:
      x: activations of any shape (NCHW in the original module).
      layer_norm_constant: scalar, rms of the wrapped layer's initial weights.
      min_pallas_bytes: tensors smaller than this use a plain-JAX fast path.
      alias_input: if True, alias x's buffer to the output (only when the
        caller does not reuse x).

    Returns:
      Array with the same shape/dtype as x.
    """
    orig_shape = x.shape
    total = int(x.size)
    scale_f32 = jnp.asarray(layer_norm_constant, dtype=jnp.float32)

    if total == 0:
        return x

    total_bytes = total * x.dtype.itemsize

    # Fast path: tiny tensors — pure launch overhead; XLA's fused multiply wins.
    if total_bytes < min_pallas_bytes:
        return (scale_f32.astype(x.dtype) * x).reshape(orig_shape)

    flat = x.reshape(total)

    f2 = _pick_lane_width(total)
    if f2 > 0:
        rem = 0
        main_elems = total
    else:
        f2 = 1024                     # fixed lane-dense slab; tail handled in JAX
        rem = total % f2
        main_elems = total - rem
        if main_elems == 0:
            return (scale_f32.astype(x.dtype) * x).reshape(orig_shape)

    rows = main_elems // f2
    x2 = (flat[:main_elems] if rem else flat).reshape(rows, f2)

    main_out = _eqlr_scale_pallas(x2, scale_f32, alias_input=alias_input)

    if rem:
        # Atypical path (element count not 128-divisible): scale the short tail
        # in plain JAX and stitch the flat result back together.
        tail = scale_f32.astype(x.dtype) * flat[main_elems:]
        flat_out = jnp.concatenate([main_out.reshape(main_elems), tail])
        return flat_out.reshape(orig_shape)

    # TODO(synk): per-channel bias add is omitted — bias_ is always None in the
    # original module (constructor strips the bias; the forward branch is dead).
    return main_out.reshape(orig_shape)


if __name__ == "__main__":
    key = jax.random.PRNGKey(0)
    k_w, k_x1, k_x2, k_x3 = jax.random.split(key, 4)

    # Mirror the module's __init__: kaiming_normal_(weight, a=calculate_gain('conv2d')).
    # calculate_gain('conv2d') == 1.0 -> gain = sqrt(2/(1+1^2)) = 1, fan_in mode.
    out_ch, in_ch, kh, kw = 8, 4, 3, 3
    a = 1.0
    gain = math.sqrt(2.0 / (1.0 + a * a))
    fan_in = in_ch * kh * kw
    std = gain / math.sqrt(fan_in)
    weight = std * jax.random.normal(k_w, (out_ch, in_ch, kh, kw), dtype=jnp.float32)
    layer_norm_constant = jnp.sqrt(jnp.mean(weight ** 2))  # rms of init weights

    # 1) Module-sized tiny input: plain-JAX fast path.
    x_small = jax.random.normal(k_x1, (2, 4, 16, 16), dtype=jnp.float32)
    y_small = jax.block_until_ready(equalized_lr_forward(x_small, layer_norm_constant))
    assert y_small.shape == x_small.shape and y_small.dtype == x_small.dtype
    assert bool(jnp.allclose(y_small, layer_norm_constant * x_small, rtol=1e-6, atol=1e-6))

    # 2) Same tiny input forced through the Pallas path (single-block grid).
    y_small_k = jax.block_until_ready(
        equalized_lr_forward(x_small, layer_norm_constant, min_pallas_bytes=0))
    assert bool(jnp.allclose(y_small_k, layer_norm_constant * x_small, rtol=1e-6, atol=1e-6))

    # 3) Larger activation: 8192-lane blocks, multi-step pipelined grid.
    x_big = jax.random.normal(k_x2, (4, 32, 64, 64), dtype=jnp.float32)
    y_big = jax.block_until_ready(equalized_lr_forward(x_big, layer_norm_constant))
    assert y_big.shape == x_big.shape and y_big.dtype == x_big.dtype
    assert bool(jnp.allclose(y_big, layer_norm_constant * x_big, rtol=1e-6, atol=1e-6))

    # 4) Element count not 128-divisible: Pallas main slab + plain-JAX tail.
    x_odd = jax.random.normal(k_x3, (2, 3, 37, 41), dtype=jnp.float32)
    y_odd = jax.block_until_ready(
        equalized_lr_forward(x_odd, layer_norm_constant, min_pallas_bytes=0))
    assert y_odd.shape == x_odd.shape
    assert bool(jnp.allclose(y_odd, layer_norm_constant * x_odd, rtol=1e-6, atol=1e-6))

    # 5) bf16 input: multiply stays in the packed native dtype inside the kernel.
    x_bf16 = x_big.astype(jnp.bfloat16)
    y_bf16 = jax.block_until_ready(
        equalized_lr_forward(x_bf16, layer_norm_constant, min_pallas_bytes=0))
    ref_bf16 = layer_norm_constant.astype(jnp.bfloat16) * x_bf16
    assert y_bf16.dtype == jnp.bfloat16
    assert bool(jnp.allclose(y_bf16.astype(jnp.float32), ref_bf16.astype(jnp.float32),
                             rtol=1e-2, atol=1e-2))

    print("KERNEL_OK")
</pallas_src>

<mosaic_0001>
module attributes {stable_mosaic.version = 11 : i64} {
  func.func @_eqlr_scale_kernel(%arg0: i32, %arg1: memref<1x1xf32, #tpu.memory_space<smem>>, %arg2: memref<1x2048xf32, #tpu.memory_space<vmem>>, %arg3: memref<1x2048xf32, #tpu.memory_space<vmem>>) attributes {dimension_semantics = [#tpu.dimension_semantics<parallel>], iteration_bounds = array<i64: 1>, scalar_prefetch = 0 : i64, scratch_operands = 0 : i64, tpu.core_type = #tpu.core_type<tc>, window_params = [{transform_indices = @transform_0, window_bounds = array<i64: 1, 1>}, {transform_indices = @transform_1, window_bounds = array<i64: 1, 2048>}, {transform_indices = @transform_2, window_bounds = array<i64: 1, 2048>}]} {
    %c0 = arith.constant 0 : index
    %c0_0 = arith.constant 0 : index
    %0 = memref.load %arg1[%c0, %c0_0] : memref<1x1xf32, #tpu.memory_space<smem>>
    %c0_1 = arith.constant 0 : index
    %c0_2 = arith.constant 0 : index
    %1 = vector.load %arg2[%c0_1, %c0_2] : memref<1x2048xf32, #tpu.memory_space<vmem>>, vector<1x2048xf32>
    %2 = vector.broadcast %0 : f32 to vector<1x2048xf32>
    %3 = arith.mulf %1, %2 : vector<1x2048xf32>
    %c0_3 = arith.constant 0 : index
    %c0_4 = arith.constant 0 : index
    %4 = vector.load %arg3[%c0_3, %c0_4] : memref<1x2048xf32, #tpu.memory_space<vmem>>, vector<1x2048xf32>
    tpu.vector_store %arg3[%c0_3, %c0_4], %3 {strides = array<i32>} : memref<1x2048xf32, #tpu.memory_space<vmem>>, vector<1x2048xf32>,
    return
  }
  func.func @transform_0(%arg0: i32) -> (i32, i32) {
    %c0_i32 = arith.constant 0 : i32
    %c0_i32_0 = arith.constant 0 : i32
    %c0_i32_1 = arith.constant 0 : i32
    return %c0_i32, %c0_i32_0 : i32, i32
  }
  func.func @transform_1(%arg0: i32) -> (i32, i32) {
    %c0_i32 = arith.constant 0 : i32
    %c0_i32_0 = arith.constant 0 : i32
    return %arg0, %c0_i32 : i32, i32
  }
  func.func @transform_2(%arg0: i32) -> (i32, i32) {
    %c0_i32 = arith.constant 0 : i32
    %c0_i32_0 = arith.constant 0 : i32
    return %arg0, %c0_i32 : i32, i32
  }
}

</mosaic_0001>

<llo_original>
// kernel: tpu_custom_call.1
$region0: #{tpu_custom_call.1}
  #allocation0 [shape = 'u32[]', space=smem, size = 0x4, offset = 0x4, fixed_abs, tag = 'smem constant byte address 0x4 - core index']
  #allocation1 [shape = 'u32[144,128]{1,0:T(1,128)}', space=vmem, size = 0x12000, scoped, tag = 'internal scratch']
  #allocation2 [shape = 'f32[1,1]{1,0:T(1,128)S(6)}', space=smem, size = 0x200, scoped, tag = 'scoped memory for tpu_custom_call.1']
  %s0 = inlined_call_operand.<no memory space> [shape: f32[1,1], index: 0, kind: input, shape index: {}]
  %s1 = inlined_call_operand.hbm [shape: f32[1,2048], index: 1, kind: input, shape index: {}]
  %s2 = inlined_call_operand.hbm [shape: f32[1,2048], index: 2, kind: output, shape index: {}]
  %s3 = sld [smem:[#allocation0]]
  $region22: #{tpu_custom_call.1} parent=0
    _
  %s5 = ssub.s32 1, %s3
  %s6 = scalar_select 0, %s5, %s3
  %7 = sst [smem:[#allocation2]] %s0
  $region1: #{tpu_custom_call.1} parent=0
    #allocation3 [shape = 'u8[8192]{0}', space=vmem, size = 0x2000, scoped, tag = 'input window, operand 1, single buffered']
    #allocation4 [shape = 's32[1]{0}', space=sflag, size = 0x4, scoped, tag = 'scoped memory for tpu_custom_call.1']
    #allocation5 [shape = 's32[1]{0}', space=sflag, size = 0x4, scoped, tag = 'scoped memory for tpu_custom_call.1']
    #allocation6 [shape = 'u8[8192]{0}', space=vmem, size = 0x2000, scoped, tag = 'output window, operand 0, single buffered']
    %8 = vsyncpa [#allocation4], 0
    %9 = vsyncpa [#allocation5], 0
    // Predicated region
    $region2: #{tpu_custom_call.1} parent=1 // pred_check
      _
    $region3: #{tpu_custom_call.1} parent=1 // pred_check_branch
      %11 = sbr.rel (0) target = $region5
    $region4: #{tpu_custom_call.1} parent=1 // pred_region
      _
    $region5: #{tpu_custom_call.1} parent=1 // pred_fallthru
      _
    // Predicated region
    $region6: #{tpu_custom_call.1} parent=1 // pred_check
      _
    $region7: #{tpu_custom_call.1} parent=1 // pred_check_branch
      %13 = sbr.rel (0) target = $region9
    $region8: #{tpu_custom_call.1} parent=1 // pred_region
      %s15 = ssub.s32 256, 256
      %16 = vsyncadd [#allocation4], %s15
      %s18 = sshll.u32 [#allocation3], 4
      %s19 = int_to_ptr.vmem [resolvable:$true] %s18
      %21 = dma.hbm_to_vmem [thread:$0]  %s1, 256, %s19, [#allocation4]
    $region9: #{tpu_custom_call.1} parent=1 // pred_fallthru
      _
    // Predicated region
    $region10: #{tpu_custom_call.1} parent=1 // pred_check
      _
    $region11: #{tpu_custom_call.1} parent=1 // pred_check_branch
      %23 = sbr.rel (0) target = $region13
    $region12: #{tpu_custom_call.1} parent=1 // pred_region
      %24 = dma.done [#allocation4], 256
    $region13: #{tpu_custom_call.1} parent=1 // pred_fallthru
      _
    %s25 = sld [smem:[#allocation2]]
    %v26 = vld [vmem:[#allocation3] sm:$0xff]
    %v27 = vld [vmem:[#allocation3 + $0x8] sm:$0xff]
    %v28 = vstv %s25
    %v29 = vmul.f32 %v26, %v28
    %v30 = vmul.f32 %v27, %v28
    %31 = vst [vmem:[#allocation6] sm:$0xff] %v29
    %32 = vst [vmem:[#allocation6 + $0x8] sm:$0xff] %v30
    // Predicated region
    $region14: #{tpu_custom_call.1} parent=1 // pred_check
      _
    $region15: #{tpu_custom_call.1} parent=1 // pred_check_branch
      %34 = sbr.rel (0) target = $region17
    $region16: #{tpu_custom_call.1} parent=1 // pred_region
      %s36 = ssub.s32 256, 256
      %37 = vsyncadd [#allocation5], %s36
      %s39 = sshll.u32 [#allocation6], 4
      %s40 = int_to_ptr.vmem [resolvable:$true] %s39
      %42 = dma.vmem_to_hbm [thread:$0]  %s40, 256, %s2, [#allocation5]
    $region17: #{tpu_custom_call.1} parent=1 // pred_fallthru
      _
    // Predicated region
    $region18: #{tpu_custom_call.1} parent=1 // pred_check
      _
    $region19: #{tpu_custom_call.1} parent=1 // pred_check_branch
      %44 = sbr.rel (0) target = $region21
    $region20: #{tpu_custom_call.1} parent=1 // pred_region
      %45 = dma.done [#allocation5], 256
    $region21: #{tpu_custom_call.1} parent=1 // pred_fallthru
      _
    %46 = vsyncpa [#allocation4], 1
    %47 = vsyncpa [#allocation5], 1

</llo_original>
